<compile_context>
chip_gen: v6e
topology: v6e:2x2x1
jax: 0.10.0
libtpu: 0.0.40
codegen_flags: <defaults>
</compile_context>

<pallas_src>
import functools

import jax
import jax.numpy as jnp
from jax.experimental import pallas as pl
from jax.experimental.pallas import tpu as pltpu


def _in_block_kernel(x_ref, w_ref, b_ref, gamma_ref, beta_ref, o_ref, *,
                     H, W, Cin_p, Cout, K, nb, num_groups, eps, neg_slope, use_norm):
    # x_ref:     (nb, Cin_p, H*W)   channels-on-sublanes, spatial flattened onto lanes
    # w_ref:     (Cout, K*K*Cin_p)  conv weight, taps ordered (ky, kx, cin)
    # b_ref / gamma_ref / beta_ref: (Cout, 1) float32
    # o_ref:     (nb, Cout, H*W)    float32 output
    HW = H * W
    pad = (K - 1) // 2

    # ---- per-tap validity masks: built once per grid step, shared by all samples ----
    lane = jax.lax.broadcasted_iota(jnp.int32, (Cin_p, HW), 1)
    col = (lane & (W - 1)) if (W & (W - 1)) == 0 else (lane % W)

    row_masks = {}
    col_masks = {}
    for ky in range(K):
        dy = ky - pad
        if dy != 0 and dy not in row_masks:
            row_masks[dy] = (lane >= (-dy) * W) if dy < 0 else (lane < (H - dy) * W)
    for kx in range(K):
        dx = kx - pad
        if dx != 0 and dx not in col_masks:
            col_masks[dx] = (col >= -dx) if dx < 0 else (col < (W - dx))

    tap_masks = {}
    for ky in range(K):
        dy = ky - pad
        rm = row_masks.get(dy)
        for kx in range(K):
            dx = kx - pad
            cm = col_masks.get(dx)
            if rm is None:
                tap_masks[(dy, dx)] = cm
            elif cm is None:
                tap_masks[(dy, dx)] = rm
            else:
                tap_masks[(dy, dx)] = jnp.logical_and(rm, cm)

    w = w_ref[...]                                  # (Cout, K*K*Cin_p), hoisted
    bias = b_ref[...]                               # (Cout, 1)
    gamma = gamma_ref[...]
    beta = beta_ref[...]
    cg = Cout // num_groups if use_norm else Cout
    inv_count = 1.0 / float(HW * cg)

    for j in range(nb):                             # static, nb is small
        x2 = x_ref[j]                               # (Cin_p, HW), MXU dtype
        # In-kernel im2col: each (dy, dx) tap is a lane roll of the flattened image
        # plus zeroing of out-of-bounds lanes (XLU/VPU work that co-issues with MXU).
        pieces = []
        for ky in range(K):
            dy = ky - pad
            for kx in range(K):
                dx = kx - pad
                d = dy * W + dx
                shifted = x2 if d == 0 else pltpu.roll(x2, shift=(-d) % HW, axis=1)
                m = tap_masks[(dy, dx)]
                pieces.append(shifted if m is None else jnp.where(m, shifted, 0))
        patches = jnp.concatenate(pieces, axis=0)   # (K*K*Cin_p, HW)

        # Single MXU push (contraction K*K*Cin_p), f32 accumulation, bias add.
        y = jnp.dot(w, patches, preferred_element_type=jnp.float32) + bias  # (Cout, HW)

        if use_norm:
            # GroupNorm: per-group stats over (cg channels x HW lanes), all in registers.
            s1 = jnp.sum(y, axis=1, keepdims=True)            # (Cout, 1) lane reduce
            mean_parts = []
            for g in range(num_groups):
                mu = jnp.sum(s1[g * cg:(g + 1) * cg, :], axis=0, keepdims=True) * inv_count
                mean_parts.append(jnp.broadcast_to(mu, (cg, 1)))
            mean_c = jnp.concatenate(mean_parts, axis=0)       # (Cout, 1)
            d_ = y - mean_c
            s2 = jnp.sum(d_ * d_, axis=1, keepdims=True)       # (Cout, 1)
            inv_parts = []
            for g in range(num_groups):
                v = jnp.sum(s2[g * cg:(g + 1) * cg, :], axis=0, keepdims=True) * inv_count
                inv_parts.append(jnp.broadcast_to(jax.lax.rsqrt(v + eps), (cg, 1)))
            inv_c = jnp.concatenate(inv_parts, axis=0)         # (Cout, 1)
            y = d_ * (inv_c * gamma) + beta

        # LeakyReLU + ONE full lane-dense store for this sample.
        o_ref[j] = jnp.where(y >= 0.0, y, neg_slope * y)


def in_block_forward(x_nchw, w_oihw, bias, gamma, beta, *,
                     num_groups=2, eps=1e-5, neg_slope=0.2, use_norm=True,
                     samples_per_block=1, mxu_dtype=jnp.bfloat16):
    """InBlock forward: Conv2d(K, stride 1, same pad) [-> GroupNorm] -> LeakyReLU(0.2).

    x_nchw: (N, Cin, H, W) float32.  Returns (N, Cout, H, W) float32.
    mxu_dtype: dtype of the im2col + conv-matmul operands (bfloat16 recommended on
               v6e/v7x, float32 on v5e).  Accumulation is always float32.
    samples_per_block: 1 -> batch on a "parallel" grid axis (v7x: one sample per TC);
               N -> whole batch in one grid step (best for single-TC v5e/v6e).
    """
    N, Cin, H, W = x_nchw.shape
    Cout, Cin_w, K, K2 = w_oihw.shape
    assert Cin_w == Cin and K == K2 and K % 2 == 1
    if use_norm:
        assert Cout % num_groups == 0
    nb = samples_per_block
    assert 1 <= nb <= N and N % nb == 0
    HW = H * W

    # Pad Cin to a multiple of 8 so every im2col piece is a full sublane slab.
    Cin_p = ((Cin + 7) // 8) * 8

    # Early cast to MXU dtype (halves input DMA + vector work on v6e/v7x); keep f32
    # here on v5e.  Flattening H,W onto lanes is a trailing-dims merge (free).
    x_p = x_nchw.astype(mxu_dtype)
    if Cin_p != Cin:
        x_p = jnp.pad(x_p, ((0, 0), (0, Cin_p - Cin), (0, 0), (0, 0)))
    x_flat = x_p.reshape(N, Cin_p, HW)

    # Conv weight as (Cout, K*K*Cin_p) with taps ordered (ky, kx, cin); padded cin rows
    # are zero so they contribute nothing to the contraction.
    w_t = jnp.transpose(w_oihw, (0, 2, 3, 1))                     # (Cout, K, K, Cin)
    if Cin_p != Cin:
        w_t = jnp.pad(w_t, ((0, 0), (0, 0), (0, 0), (0, Cin_p - Cin)))
    w2d = w_t.reshape(Cout, K * K * Cin_p).astype(mxu_dtype)

    b2 = bias.reshape(Cout, 1).astype(jnp.float32)
    g2 = gamma.reshape(Cout, 1).astype(jnp.float32)
    be2 = beta.reshape(Cout, 1).astype(jnp.float32)

    kernel = functools.partial(
        _in_block_kernel, H=H, W=W, Cin_p=Cin_p, Cout=Cout, K=K, nb=nb,
        num_groups=num_groups, eps=eps, neg_slope=neg_slope, use_norm=use_norm)

    out = pl.pallas_call(
        kernel,
        out_shape=jax.ShapeDtypeStruct((N, Cout, HW), jnp.float32),
        grid_spec=pltpu.PrefetchScalarGridSpec(
            num_scalar_prefetch=0,
            grid=(N // nb,),
            in_specs=[
                pl.BlockSpec((nb, Cin_p, HW), lambda i: (i, 0, 0)),
                pl.BlockSpec((Cout, K * K * Cin_p), lambda i: (0, 0)),
                pl.BlockSpec((Cout, 1), lambda i: (0, 0)),
                pl.BlockSpec((Cout, 1), lambda i: (0, 0)),
                pl.BlockSpec((Cout, 1), lambda i: (0, 0)),
            ],
            out_specs=pl.BlockSpec((nb, Cout, HW), lambda i: (i, 0, 0)),
        ),
        compiler_params=pltpu.CompilerParams(
            dimension_semantics=("parallel",)),
    )(x_flat, w2d, b2, g2, be2)

    # Free trailing-dim split back to NCHW.
    return out.reshape(N, Cout, H, W)


def _reference_forward(x_nchw, w_oihw, bias, gamma, beta, *,
                       num_groups=2, eps=1e-5, neg_slope=0.2, use_norm=True):
    pad = (w_oihw.shape[-1] - 1) // 2
    y = jax.lax.conv_general_dilated(
        x_nchw, w_oihw, window_strides=(1, 1), padding=((pad, pad), (pad, pad)),
        dimension_numbers=('NCHW', 'OIHW', 'NCHW'),
        precision=jax.lax.Precision.HIGHEST)
    y = y + bias[None, :, None, None]
    if use_norm:
        N, C, H, W = y.shape
        yg = y.reshape(N, num_groups, C // num_groups, H, W)
        mean = yg.mean(axis=(2, 3, 4), keepdims=True)
        var = ((yg - mean) ** 2).mean(axis=(2, 3, 4), keepdims=True)
        y = ((yg - mean) / jnp.sqrt(var + eps)).reshape(N, C, H, W)
        y = y * gamma[None, :, None, None] + beta[None, :, None, None]
    return jnp.where(y >= 0, y, neg_slope * y)


if __name__ == "__main__":
    # InBlock(in_ch=4, out_ch=8, kernel_size=3, num_groups=2, use_norm=True)
    N, Cin, Cout, H, W, K, NG = 2, 4, 8, 16, 16, 3, 2

    key = jax.random.PRNGKey(0)
    kx, kw, kb, kg, kbe = jax.random.split(key, 5)

    x = jax.random.normal(kx, (N, Cin, H, W), jnp.float32)
    w = 0.1 * jax.random.normal(kw, (Cout, Cin, K, K), jnp.float32)   # OIHW
    b = 0.1 * jax.random.normal(kb, (Cout,), jnp.float32)
    gamma = 1.0 + 0.1 * jax.random.normal(kg, (Cout,), jnp.float32)
    beta = 0.1 * jax.random.normal(kbe, (Cout,), jnp.float32)

    ref = _reference_forward(x, w, b, gamma, beta, num_groups=NG)

    # 1) f32 MXU operands, one sample per grid step (v5e dtype path; v7x megacore batch).
    out = jax.block_until_ready(in_block_forward(
        x, w, b, gamma, beta, num_groups=NG,
        mxu_dtype=jnp.float32, samples_per_block=1))
    assert out.shape == (N, Cout, H, W)
    err = float(jnp.max(jnp.abs(out - ref)))
    assert jnp.allclose(out, ref, atol=5e-4, rtol=5e-4), f"f32/nb=1 max abs err {err}"

    # 2) bf16 operands cast before im2col, f32 accumulation (v6e/v7x path).
    out = jax.block_until_ready(in_block_forward(
        x, w, b, gamma, beta, num_groups=NG,
        mxu_dtype=jnp.bfloat16, samples_per_block=1))
    err = float(jnp.max(jnp.abs(out - ref)))
    assert jnp.allclose(out, ref, atol=5e-2, rtol=5e-2), f"bf16/nb=1 max abs err {err}"

    # 3) Whole batch folded into a single grid step (single-TC v5e/v6e path).
    out = jax.block_until_ready(in_block_forward(
        x, w, b, gamma, beta, num_groups=NG,
        mxu_dtype=jnp.float32, samples_per_block=N))
    err = float(jnp.max(jnp.abs(out - ref)))
    assert jnp.allclose(out, ref, atol=5e-4, rtol=5e-4), f"f32/nb=N max abs err {err}"

    # 4) use_norm=False variant (Conv -> LeakyReLU only).
    ref_nn = _reference_forward(x, w, b, gamma, beta, num_groups=NG, use_norm=False)
    out = jax.block_until_ready(in_block_forward(
        x, w, b, gamma, beta, num_groups=NG,
        mxu_dtype=jnp.float32, samples_per_block=1, use_norm=False))
    err = float(jnp.max(jnp.abs(out - ref_nn)))
    assert jnp.allclose(out, ref_nn, atol=5e-4, rtol=5e-4), f"no-norm max abs err {err}"

    print("KERNEL_OK")
</pallas_src>

<mosaic_0001>
module attributes {stable_mosaic.version = 11 : i64} {
  func.func @_in_block_kernel(%arg0: i32, %arg1: memref<1x8x256xf32, #tpu.memory_space<vmem>>, %arg2: memref<8x72xf32, #tpu.memory_space<vmem>>, %arg3: memref<8x1xf32, #tpu.memory_space<vmem>>, %arg4: memref<8x1xf32, #tpu.memory_space<vmem>>, %arg5: memref<8x1xf32, #tpu.memory_space<vmem>>, %arg6: memref<1x8x256xf32, #tpu.memory_space<vmem>>) attributes {dimension_semantics = [#tpu.dimension_semantics<parallel>], iteration_bounds = array<i64: 2>, scalar_prefetch = 0 : i64, scratch_operands = 0 : i64, tpu.core_type = #tpu.core_type<tc>, window_params = [{transform_indices = @transform_0, window_bounds = array<i64: 1, 8, 256>}, {pipeline_mode = #tpu.pipeline_mode<synchronous>, transform_indices = @transform_1, window_bounds = array<i64: 8, 72>}, {pipeline_mode = #tpu.pipeline_mode<synchronous>, transform_indices = @transform_2, window_bounds = array<i64: 8, 1>}, {pipeline_mode = #tpu.pipeline_mode<synchronous>, transform_indices = @transform_3, window_bounds = array<i64: 8, 1>}, {pipeline_mode = #tpu.pipeline_mode<synchronous>, transform_indices = @transform_4, window_bounds = array<i64: 8, 1>}, {transform_indices = @transform_5, window_bounds = array<i64: 1, 8, 256>}]} {
    %0 = tpu.iota {dimensions = array<i32: 1>} : vector<8x256xi32>
    %c15_i32 = arith.constant 15 : i32
    %1 = vector.broadcast %c15_i32 : i32 to vector<8x256xi32>
    %2 = arith.andi %0, %1 : vector<8x256xi32>
    %c16_i32 = arith.constant 16 : i32
    %3 = vector.broadcast %c16_i32 : i32 to vector<8x256xi32>
    %4 = arith.cmpi sge, %0, %3 : vector<8x256xi32>
    %c240_i32 = arith.constant 240 : i32
    %5 = vector.broadcast %c240_i32 : i32 to vector<8x256xi32>
    %6 = arith.cmpi slt, %0, %5 : vector<8x256xi32>
    %c1_i32 = arith.constant 1 : i32
    %7 = vector.broadcast %c1_i32 : i32 to vector<8x256xi32>
    %8 = arith.cmpi sge, %2, %7 : vector<8x256xi32>
    %c15_i32_0 = arith.constant 15 : i32
    %9 = vector.broadcast %c15_i32_0 : i32 to vector<8x256xi32>
    %10 = arith.cmpi slt, %2, %9 : vector<8x256xi32>
    %11 = arith.andi %4, %8 : vector<8x256xi1>
    %12 = arith.andi %4, %10 : vector<8x256xi1>
    %13 = arith.andi %6, %8 : vector<8x256xi1>
    %14 = arith.andi %6, %10 : vector<8x256xi1>
    %c0 = arith.constant 0 : index
    %c0_1 = arith.constant 0 : index
    %15 = vector.load %arg2[%c0, %c0_1] : memref<8x72xf32, #tpu.memory_space<vmem>>, vector<8x72xf32>
    %c0_2 = arith.constant 0 : index
    %c0_3 = arith.constant 0 : index
    %16 = vector.load %arg3[%c0_2, %c0_3] : memref<8x1xf32, #tpu.memory_space<vmem>>, vector<8x1xf32>
    %c0_4 = arith.constant 0 : index
    %c0_5 = arith.constant 0 : index
    %17 = vector.load %arg4[%c0_4, %c0_5] : memref<8x1xf32, #tpu.memory_space<vmem>>, vector<8x1xf32>
    %c0_6 = arith.constant 0 : index
    %c0_7 = arith.constant 0 : index
    %18 = vector.load %arg5[%c0_6, %c0_7] : memref<8x1xf32, #tpu.memory_space<vmem>>, vector<8x1xf32>
    %c0_8 = arith.constant 0 : index
    %c0_9 = arith.constant 0 : index
    %c0_10 = arith.constant 0 : index
    %19 = vector.load %arg1[%c0_8, %c0_9, %c0_10] : memref<1x8x256xf32, #tpu.memory_space<vmem>>, vector<1x8x256xf32>
    %20 = vector.shape_cast %19 : vector<1x8x256xf32> to vector<8x256xf32>
    %c17_i32 = arith.constant 17 : i32
    %21 = tpu.dynamic_rotate %20 by %c17_i32 dim 1 : vector<8x256xf32>, i32 -> vector<8x256xf32>
    %c0_i32 = arith.constant 0 : i32
    %22 = arith.sitofp %c0_i32 : i32 to f32
    %23 = vector.broadcast %22 : f32 to vector<8x256xf32>
    %24 = arith.select %11, %21, %23 : vector<8x256xi1>, vector<8x256xf32>
    %c16_i32_11 = arith.constant 16 : i32
    %25 = tpu.dynamic_rotate %20 by %c16_i32_11 dim 1 : vector<8x256xf32>, i32 -> vector<8x256xf32>
    %c0_i32_12 = arith.constant 0 : i32
    %26 = arith.sitofp %c0_i32_12 : i32 to f32
    %27 = vector.broadcast %26 : f32 to vector<8x256xf32>
    %28 = arith.select %4, %25, %27 : vector<8x256xi1>, vector<8x256xf32>
    %c15_i32_13 = arith.constant 15 : i32
    %29 = tpu.dynamic_rotate %20 by %c15_i32_13 dim 1 : vector<8x256xf32>, i32 -> vector<8x256xf32>
    %c0_i32_14 = arith.constant 0 : i32
    %30 = arith.sitofp %c0_i32_14 : i32 to f32
    %31 = vector.broadcast %30 : f32 to vector<8x256xf32>
    %32 = arith.select %12, %29, %31 : vector<8x256xi1>, vector<8x256xf32>
    %c1_i32_15 = arith.constant 1 : i32
    %33 = tpu.dynamic_rotate %20 by %c1_i32_15 dim 1 : vector<8x256xf32>, i32 -> vector<8x256xf32>
    %c0_i32_16 = arith.constant 0 : i32
    %34 = arith.sitofp %c0_i32_16 : i32 to f32
    %35 = vector.broadcast %34 : f32 to vector<8x256xf32>
    %36 = arith.select %8, %33, %35 : vector<8x256xi1>, vector<8x256xf32>
    %c255_i32 = arith.constant 255 : i32
    %37 = tpu.dynamic_rotate %20 by %c255_i32 dim 1 : vector<8x256xf32>, i32 -> vector<8x256xf32>
    %c0_i32_17 = arith.constant 0 : i32
    %38 = arith.sitofp %c0_i32_17 : i32 to f32
    %39 = vector.broadcast %38 : f32 to vector<8x256xf32>
    %40 = arith.select %10, %37, %39 : vector<8x256xi1>, vector<8x256xf32>
    %c241_i32 = arith.constant 241 : i32
    %41 = tpu.dynamic_rotate %20 by %c241_i32 dim 1 : vector<8x256xf32>, i32 -> vector<8x256xf32>
    %c0_i32_18 = arith.constant 0 : i32
    %42 = arith.sitofp %c0_i32_18 : i32 to f32
    %43 = vector.broadcast %42 : f32 to vector<8x256xf32>
    %44 = arith.select %13, %41, %43 : vector<8x256xi1>, vector<8x256xf32>
    %c240_i32_19 = arith.constant 240 : i32
    %45 = tpu.dynamic_rotate %20 by %c240_i32_19 dim 1 : vector<8x256xf32>, i32 -> vector<8x256xf32>
    %c0_i32_20 = arith.constant 0 : i32
    %46 = arith.sitofp %c0_i32_20 : i32 to f32
    %47 = vector.broadcast %46 : f32 to vector<8x256xf32>
    %48 = arith.select %6, %45, %47 : vector<8x256xi1>, vector<8x256xf32>
    %c239_i32 = arith.constant 239 : i32
    %49 = tpu.dynamic_rotate %20 by %c239_i32 dim 1 : vector<8x256xf32>, i32 -> vector<8x256xf32>
    %c0_i32_21 = arith.constant 0 : i32
    %50 = arith.sitofp %c0_i32_21 : i32 to f32
    %51 = vector.broadcast %50 : f32 to vector<8x256xf32>
    %52 = arith.select %14, %49, %51 : vector<8x256xi1>, vector<8x256xf32>
    %53 = tpu.concatenate %24, %28, %32, %36, %20, %40, %44, %48, %52 in 0 : vector<8x256xf32>, vector<8x256xf32>, vector<8x256xf32>, vector<8x256xf32>, vector<8x256xf32>, vector<8x256xf32>, vector<8x256xf32>, vector<8x256xf32>, vector<8x256xf32> -> vector<72x256xf32>
    %cst = arith.constant dense<0.000000e+00> : vector<8x256xf32>
    %54 = tpu.matmul %15, %53, %cst {dimension_numbers = #tpu.dot_dimension_numbers<[1], [0], [0], [1], [0, 0, 1, 1], [], []>} : vector<8x72xf32>, vector<72x256xf32>, vector<8x256xf32> -> vector<8x256xf32>
    %55 = vector.broadcast %16 : vector<8x1xf32> to vector<8x256xf32>
    %56 = arith.addf %54, %55 : vector<8x256xf32>
    %cst_22 = arith.constant dense<0.000000e+00> : vector<8xf32>
    %57 = vector.multi_reduction <add>, %56, %cst_22 [1] : vector<8x256xf32> to vector<8xf32>
    %58 = vector.shape_cast %57 : vector<8xf32> to vector<8x1xf32>
    %59 = vector.extract_strided_slice %58 {offsets = [0, 0], sizes = [4, 1], strides = [1, 1]} : vector<8x1xf32> to vector<4x1xf32>
    %cst_23 = arith.constant dense<0.000000e+00> : vector<1xf32>
    %60 = vector.multi_reduction <add>, %59, %cst_23 [0] : vector<4x1xf32> to vector<1xf32>
    %61 = vector.shape_cast %60 : vector<1xf32> to vector<1x1xf32>
    %cst_24 = arith.constant 9.765625E-4 : f32
    %62 = vector.broadcast %cst_24 : f32 to vector<1x1xf32>
    %63 = arith.mulf %61, %62 : vector<1x1xf32>
    %64 = vector.shape_cast %63 : vector<1x1xf32> to vector<1x1xf32>
    %65 = vector.broadcast %64 : vector<1x1xf32> to vector<4x1xf32>
    %66 = vector.extract_strided_slice %58 {offsets = [4, 0], sizes = [4, 1], strides = [1, 1]} : vector<8x1xf32> to vector<4x1xf32>
    %cst_25 = arith.constant dense<0.000000e+00> : vector<1xf32>
    %67 = vector.multi_reduction <add>, %66, %cst_25 [0] : vector<4x1xf32> to vector<1xf32>
    %68 = vector.shape_cast %67 : vector<1xf32> to vector<1x1xf32>
    %cst_26 = arith.constant 9.765625E-4 : f32
    %69 = vector.broadcast %cst_26 : f32 to vector<1x1xf32>
    %70 = arith.mulf %68, %69 : vector<1x1xf32>
    %71 = vector.shape_cast %70 : vector<1x1xf32> to vector<1x1xf32>
    %72 = vector.broadcast %71 : vector<1x1xf32> to vector<4x1xf32>
    %73 = tpu.concatenate %65, %72 in 0 : vector<4x1xf32>, vector<4x1xf32> -> vector<8x1xf32>
    %74 = vector.broadcast %73 : vector<8x1xf32> to vector<8x256xf32>
    %75 = arith.subf %56, %74 : vector<8x256xf32>
    %76 = arith.mulf %75, %75 : vector<8x256xf32>
    %cst_27 = arith.constant dense<0.000000e+00> : vector<8xf32>
    %77 = vector.multi_reduction <add>, %76, %cst_27 [1] : vector<8x256xf32> to vector<8xf32>
    %78 = vector.shape_cast %77 : vector<8xf32> to vector<8x1xf32>
    %79 = vector.extract_strided_slice %78 {offsets = [0, 0], sizes = [4, 1], strides = [1, 1]} : vector<8x1xf32> to vector<4x1xf32>
    %cst_28 = arith.constant dense<0.000000e+00> : vector<1xf32>
    %80 = vector.multi_reduction <add>, %79, %cst_28 [0] : vector<4x1xf32> to vector<1xf32>
    %81 = vector.shape_cast %80 : vector<1xf32> to vector<1x1xf32>
    %cst_29 = arith.constant 9.765625E-4 : f32
    %82 = vector.broadcast %cst_29 : f32 to vector<1x1xf32>
    %83 = arith.mulf %81, %82 : vector<1x1xf32>
    %cst_30 = arith.constant 9.99999974E-6 : f32
    %84 = vector.broadcast %cst_30 : f32 to vector<1x1xf32>
    %85 = arith.addf %83, %84 : vector<1x1xf32>
    %86 = math.rsqrt %85 : vector<1x1xf32>
    %87 = vector.shape_cast %86 : vector<1x1xf32> to vector<1x1xf32>
    %88 = vector.broadcast %87 : vector<1x1xf32> to vector<4x1xf32>
    %89 = vector.extract_strided_slice %78 {offsets = [4, 0], sizes = [4, 1], strides = [1, 1]} : vector<8x1xf32> to vector<4x1xf32>
    %cst_31 = arith.constant dense<0.000000e+00> : vector<1xf32>
    %90 = vector.multi_reduction <add>, %89, %cst_31 [0] : vector<4x1xf32> to vector<1xf32>
    %91 = vector.shape_cast %90 : vector<1xf32> to vector<1x1xf32>
    %cst_32 = arith.constant 9.765625E-4 : f32
    %92 = vector.broadcast %cst_32 : f32 to vector<1x1xf32>
    %93 = arith.mulf %91, %92 : vector<1x1xf32>
    %cst_33 = arith.constant 9.99999974E-6 : f32
    %94 = vector.broadcast %cst_33 : f32 to vector<1x1xf32>
    %95 = arith.addf %93, %94 : vector<1x1xf32>
    %96 = math.rsqrt %95 : vector<1x1xf32>
    %97 = vector.shape_cast %96 : vector<1x1xf32> to vector<1x1xf32>
    %98 = vector.broadcast %97 : vector<1x1xf32> to vector<4x1xf32>
    %99 = tpu.concatenate %88, %98 in 0 : vector<4x1xf32>, vector<4x1xf32> -> vector<8x1xf32>
    %100 = arith.mulf %99, %17 : vector<8x1xf32>
    %101 = vector.broadcast %100 : vector<8x1xf32> to vector<8x256xf32>
    %102 = arith.mulf %75, %101 : vector<8x256xf32>
    %103 = vector.broadcast %18 : vector<8x1xf32> to vector<8x256xf32>
    %104 = arith.addf %102, %103 : vector<8x256xf32>
    %cst_34 = arith.constant 0.000000e+00 : f32
    %105 = vector.broadcast %cst_34 : f32 to vector<8x256xf32>
    %106 = arith.cmpf oge, %104, %105 : vector<8x256xf32>
    %cst_35 = arith.constant 2.000000e-01 : f32
    %107 = vector.broadcast %cst_35 : f32 to vector<8x256xf32>
    %108 = arith.mulf %107, %104 : vector<8x256xf32>
    %109 = arith.select %106, %104, %108 : vector<8x256xi1>, vector<8x256xf32>
    %c0_36 = arith.constant 0 : index
    %c0_37 = arith.constant 0 : index
    %c0_38 = arith.constant 0 : index
    %110 = vector.load %arg6[%c0_36, %c0_37, %c0_38] : memref<1x8x256xf32, #tpu.memory_space<vmem>>, vector<1x8x256xf32>
    %111 = vector.shape_cast %110 : vector<1x8x256xf32> to vector<8x256xf32>
    %112 = vector.shape_cast %109 : vector<8x256xf32> to vector<1x8x256xf32>
    tpu.vector_store %arg6[%c0_36, %c0_37, %c0_38], %112 {strides = array<i32>} : memref<1x8x256xf32, #tpu.memory_space<vmem>>, vector<1x8x256xf32>,
    return
  }
  func.func @transform_0(%arg0: i32) -> (i32, i32, i32) {
    %c0_i32 = arith.constant 0 : i32
    %c0_i32_0 = arith.constant 0 : i32
    %c0_i32_1 = arith.constant 0 : i32
    return %arg0, %c0_i32, %c0_i32_0 : i32, i32, i32
  }
  func.func @transform_1(%arg0: i32) -> (i32, i32) {
    %c0_i32 = arith.constant 0 : i32
    %c0_i32_0 = arith.constant 0 : i32
    %c0_i32_1 = arith.constant 0 : i32
    return %c0_i32, %c0_i32_0 : i32, i32
  }
  func.func @transform_2(%arg0: i32) -> (i32, i32) {
    %c0_i32 = arith.constant 0 : i32
    %c0_i32_0 = arith.constant 0 : i32
    %c0_i32_1 = arith.constant 0 : i32
    return %c0_i32, %c0_i32_0 : i32, i32
  }
  func.func @transform_3(%arg0: i32) -> (i32, i32) {
    %c0_i32 = arith.constant 0 : i32
    %c0_i32_0 = arith.constant 0 : i32
    %c0_i32_1 = arith.constant 0 : i32
    return %c0_i32, %c0_i32_0 : i32, i32
  }
  func.func @transform_4(%arg0: i32) -> (i32, i32) {
    %c0_i32 = arith.constant 0 : i32
    %c0_i32_0 = arith.constant 0 : i32
    %c0_i32_1 = arith.constant 0 : i32
    return %c0_i32, %c0_i32_0 : i32, i32
  }
  func.func @transform_5(%arg0: i32) -> (i32, i32, i32) {
    %c0_i32 = arith.constant 0 : i32
    %c0_i32_0 = arith.constant 0 : i32
    %c0_i32_1 = arith.constant 0 : i32
    return %arg0, %c0_i32, %c0_i32_0 : i32, i32, i32
  }
}

</mosaic_0001>

<llo_original>
// kernel: tpu_custom_call.1
$region0: #{tpu_custom_call.1}
  #allocation0 [shape = 'u32[]', space=smem, size = 0x4, offset = 0x4, fixed_abs, tag = 'smem constant byte address 0x4 - core index']
  #allocation1 [shape = 'u32[144,128]{1,0:T(1,128)}', space=vmem, size = 0x12000, scoped, tag = 'internal scratch']
  %s0 = inlined_call_operand.hbm [shape: f32[2,8,256], index: 0, kind: input, shape index: {}]
  %s1 = inlined_call_operand.vmem [shape: f32[8,72], index: 1, kind: input, shape index: {}]
  %s2 = inlined_call_operand.vmem [shape: f32[8,1], index: 2, kind: input, shape index: {}]
  %s3 = inlined_call_operand.vmem [shape: f32[8,1], index: 3, kind: input, shape index: {}]
  %s4 = inlined_call_operand.vmem [shape: f32[8,1], index: 4, kind: input, shape index: {}]
  %s5 = inlined_call_operand.hbm [shape: f32[2,8,256], index: 5, kind: output, shape index: {}]
  %s6 = sld [smem:[#allocation0]]
  $region57: #{tpu_custom_call.1} parent=0
    _
  %s8 = ssub.s32 1, %s6
  %s9 = scalar_select 0, %s8, %s6
  $region1: #{tpu_custom_call.1} parent=0
    #allocation2 [shape = 'u8[16384]{0}', space=vmem, size = 0x4000, scoped, tag = 'input window, operand 0']
    #allocation3 [shape = 's32[2]{0}', space=sflag, size = 0x8, scoped, tag = 'scoped memory for tpu_custom_call.1']
    #allocation4 [shape = 's32[2]{0}', space=sflag, size = 0x8, scoped, tag = 'scoped memory for tpu_custom_call.1']
    #allocation5 [shape = 'u8[16384]{0}', space=vmem, size = 0x4000, scoped, tag = 'output window, operand 0']
    %10 = vsyncpa [#allocation3], 0
    %s11 = scalar_lea.sflag [#allocation3], 1
    %12 = vsyncpa %s11, 0
    %13 = vsyncpa [#allocation4], 0
    %s14 = scalar_lea.sflag [#allocation4], 1
    %15 = vsyncpa %s14, 0
    loop: start=0, step=1, limit=4
    $region2: #{tpu_custom_call.1} parent=1 // loop_pre_header
      _
    $region3: #{tpu_custom_call.1} parent=1 // loop_header
      %s17 = sphi 0, %s21
      %p18 = scmp.ge.s32.totalorder %s17, 4
      %s27 = sphi 0, %s29
      %s30 = sphi 0, %s27
      %s31 = sphi 0, %s30
      %s47 = sphi 0, %s31
      %s51 = sphi 0, %s51
      %s53 = sphi 0, %s51
      %s54 = sphi 0, %s53
      %s68 = sphi 0, %s54
      %s72 = sphi 0, %s72
      %s74 = sphi 0, %s72
      %s75 = sphi 0, %s74
      %s89 = sphi 0, %s75
      %s93 = sphi 0, %s93
      %s95 = sphi 0, %s93
      %s96 = sphi 0, %s95
      %s110 = sphi 0, %s96
      %s114 = sphi 0, %s114
      %s116 = sphi 0, %s114
      %s117 = sphi 0, %s116
      %s131 = sphi 0, %s117
      %s137 = sphi 0, %s139
      %s140 = sphi 0, %s137
      %s141 = sphi 0, %s140
      %s157 = sphi 0, %s141
    $region4: #{tpu_custom_call.1} parent=1 // loop_header_branch
      %20 = sbr.rel (%p18) target = $region8
    $region5: #{tpu_custom_call.1} parent=1 // loop_body
      %s22 = ssub.s32 %s17, 1
      %s23 = ssub.s32 %s17, 2
      %s24 = sadd.s32 %s17, 1
      %s25 = ssub.s32 %s17, %s24
      %p26 = scmp.eq.s32.totalorder %s25, 0
      %s28 = sadd.s32 %s27, 1
      %s29 = scalar_select %p26, %s27, %s28
      %p32 = pneg %p26
      %p33 = scmp.eq.s32.totalorder %s17, 1
      %p34 = por %p32, %p33
      %p35 = scmp.ne.s32.totalorder %s27, %s30
      %p36 = scmp.eq.s32.totalorder %s17, 0
      %p37 = por %p35, %p36
      %p38 = scmp.ne.s32.totalorder %s27, %s30
      %p39 = scmp.eq.s32.totalorder %s22, 1
      %p40 = por %p38, %p39
      %p41 = scmp.ne.s32.totalorder %s30, %s31
      %p42 = scmp.eq.s32.totalorder %s22, 0
      %p43 = por %p41, %p42
      %p44 = scmp.ne.s32.totalorder %s30, %s31
      %p45 = scmp.eq.s32.totalorder %s23, 1
      %p46 = por %p44, %p45
      %p48 = scmp.ne.s32.totalorder %s31, %s47
      %p49 = scmp.eq.s32.totalorder %s23, 0
      %p50 = por %p48, %p49
      %s52 = sadd.s32 %s51, 1
      %p55 = scmp.eq.s32.totalorder %s17, 1
      %p56 = scmp.ne.s32.totalorder %s51, %s53
      %p57 = scmp.eq.s32.totalorder %s17, 0
      %p58 = por %p56, %p57
      %p59 = scmp.ne.s32.totalorder %s51, %s53
      %p60 = scmp.eq.s32.totalorder %s22, 1
      %p61 = por %p59, %p60
      %p62 = scmp.ne.s32.totalorder %s53, %s54
      %p63 = scmp.eq.s32.totalorder %s22, 0
      %p64 = por %p62, %p63
      %p65 = scmp.ne.s32.totalorder %s53, %s54
      %p66 = scmp.eq.s32.totalorder %s23, 1
      %p67 = por %p65, %p66
      %p69 = scmp.ne.s32.totalorder %s54, %s68
      %p70 = scmp.eq.s32.totalorder %s23, 0
      %p71 = por %p69, %p70
      %s73 = sadd.s32 %s72, 1
      %p76 = scmp.eq.s32.totalorder %s17, 1
      %p77 = scmp.ne.s32.totalorder %s72, %s74
      %p78 = scmp.eq.s32.totalorder %s17, 0
      %p79 = por %p77, %p78
      %p80 = scmp.ne.s32.totalorder %s72, %s74
      %p81 = scmp.eq.s32.totalorder %s22, 1
      %p82 = por %p80, %p81
      %p83 = scmp.ne.s32.totalorder %s74, %s75
      %p84 = scmp.eq.s32.totalorder %s22, 0
      %p85 = por %p83, %p84
      %p86 = scmp.ne.s32.totalorder %s74, %s75
      %p87 = scmp.eq.s32.totalorder %s23, 1
      %p88 = por %p86, %p87
      %p90 = scmp.ne.s32.totalorder %s75, %s89
      %p91 = scmp.eq.s32.totalorder %s23, 0
      %p92 = por %p90, %p91
      %s94 = sadd.s32 %s93, 1
      %p97 = scmp.eq.s32.totalorder %s17, 1
      %p98 = scmp.ne.s32.totalorder %s93, %s95
      %p99 = scmp.eq.s32.totalorder %s17, 0
      %p100 = por %p98, %p99
      %p101 = scmp.ne.s32.totalorder %s93, %s95
      %p102 = scmp.eq.s32.totalorder %s22, 1
      %p103 = por %p101, %p102
      %p104 = scmp.ne.s32.totalorder %s95, %s96
      %p105 = scmp.eq.s32.totalorder %s22, 0
      %p106 = por %p104, %p105
      %p107 = scmp.ne.s32.totalorder %s95, %s96
      %p108 = scmp.eq.s32.totalorder %s23, 1
      %p109 = por %p107, %p108
      %p111 = scmp.ne.s32.totalorder %s96, %s110
      %p112 = scmp.eq.s32.totalorder %s23, 0
      %p113 = por %p111, %p112
      %s115 = sadd.s32 %s114, 1
      %p118 = scmp.eq.s32.totalorder %s17, 1
      %p119 = scmp.ne.s32.totalorder %s114, %s116
      %p120 = scmp.eq.s32.totalorder %s17, 0
      %p121 = por %p119, %p120
      %p122 = scmp.ne.s32.totalorder %s114, %s116
      %p123 = scmp.eq.s32.totalorder %s22, 1
      %p124 = por %p122, %p123
      %p125 = scmp.ne.s32.totalorder %s116, %s117
      %p126 = scmp.eq.s32.totalorder %s22, 0
      %p127 = por %p125, %p126
      %p128 = scmp.ne.s32.totalorder %s116, %s117
      %p129 = scmp.eq.s32.totalorder %s23, 1
      %p130 = por %p128, %p129
      %p132 = scmp.ne.s32.totalorder %s117, %s131
      %p133 = scmp.eq.s32.totalorder %s23, 0
      %p134 = por %p132, %p133
      %s135 = ssub.s32 %s17, %s24
      %p136 = scmp.eq.s32.totalorder %s135, 0
      %s138 = sadd.s32 %s137, 1
      %s139 = scalar_select %p136, %s137, %s138
      %p142 = pneg %p136
      %p143 = scmp.eq.s32.totalorder %s17, 1
      %p144 = por %p142, %p143
      %p145 = scmp.ne.s32.totalorder %s137, %s140
      %p146 = scmp.eq.s32.totalorder %s17, 0
      %p147 = por %p145, %p146
      %p148 = scmp.ne.s32.totalorder %s137, %s140
      %p149 = scmp.eq.s32.totalorder %s22, 1
      %p150 = por %p148, %p149
      %p151 = scmp.ne.s32.totalorder %s140, %s141
      %p152 = scmp.eq.s32.totalorder %s22, 0
      %p153 = por %p151, %p152
      %p154 = scmp.ne.s32.totalorder %s140, %s141
      %p155 = scmp.eq.s32.totalorder %s23, 1
      %p156 = por %p154, %p155
      %p158 = scmp.ne.s32.totalorder %s141, %s157
      %p159 = scmp.eq.s32.totalorder %s23, 0
      %p160 = por %p158, %p159
      %p161 = scmp.le.s32.totalorder 1, %s17
      %p162 = scmp.lt.s32.totalorder %s17, 3
      %p163 = pnand %p161, %p162
      %p164 = pneg %p163
      // Predicated region
      $region9: #{tpu_custom_call.1} parent=5 // pred_check
        _
      $region10: #{tpu_custom_call.1} parent=5 // pred_check_branch
        %166 = sbr.rel (%p163) target = $region12
      $region11: #{tpu_custom_call.1} parent=5 // pred_region
        %s167 = ssub.s32 %s17, 1
        // Predicated region
        $region13: #{tpu_custom_call.1} parent=11 // pred_check
          %p168 = pneg %p64
        $region14: #{tpu_custom_call.1} parent=11 // pred_check_branch
          %170 = sbr.rel (%p168) target = $region16
        $region15: #{tpu_custom_call.1} parent=11 // pred_region
          _
        $region16: #{tpu_custom_call.1} parent=11 // pred_fallthru
          _
        // Predicated region
        $region17: #{tpu_custom_call.1} parent=11 // pred_check
          %p171 = pneg %p85
        $region18: #{tpu_custom_call.1} parent=11 // pred_check_branch
          %173 = sbr.rel (%p171) target = $region20
        $region19: #{tpu_custom_call.1} parent=11 // pred_region
          _
        $region20: #{tpu_custom_call.1} parent=11 // pred_fallthru
          _
        // Predicated region
        $region21: #{tpu_custom_call.1} parent=11 // pred_check
          %p174 = pneg %p106
        $region22: #{tpu_custom_call.1} parent=11 // pred_check_branch
          %176 = sbr.rel (%p174) target = $region24
        $region23: #{tpu_custom_call.1} parent=11 // pred_region
          _
        $region24: #{tpu_custom_call.1} parent=11 // pred_fallthru
          _
        // Predicated region
        $region25: #{tpu_custom_call.1} parent=11 // pred_check
          %p177 = pneg %p127
        $region26: #{tpu_custom_call.1} parent=11 // pred_check_branch
          %179 = sbr.rel (%p177) target = $region28
        $region27: #{tpu_custom_call.1} parent=11 // pred_region
          _
        $region28: #{tpu_custom_call.1} parent=11 // pred_fallthru
          _
      $region12: #{tpu_custom_call.1} parent=5 // pred_fallthru
        _
      %p180 = scmp.lt.s32.totalorder %s17, 2
      // Predicated region
      $region29: #{tpu_custom_call.1} parent=5 // pred_check
        %p181 = pneg %p180
      $region30: #{tpu_custom_call.1} parent=5 // pred_check_branch
        %183 = sbr.rel (%p181) target = $region32
      $region31: #{tpu_custom_call.1} parent=5 // pred_region
        // Predicated region
        $region33: #{tpu_custom_call.1} parent=31 // pred_check
          %p184 = pneg %p37
        $region34: #{tpu_custom_call.1} parent=31 // pred_check_branch
          %186 = sbr.rel (%p184) target = $region36
        $region35: #{tpu_custom_call.1} parent=31 // pred_region
          %s187 = sand.u32 %s27, 1
          %s188 = scalar_lea.sflag [#allocation3], %s187
          %s189 = sand.u32 %s27, 1
          %s190 = smul.addr %s189, 16
          %s191 = scalar_lea.vmem [#allocation2], %s190
          %s193 = ssub.s32 256, 256
          %194 = vsyncadd %s188, %s193
          %s195 = smul.addr %s17, 2
          %s196 = smul.addr %s195, 128
          %s197 = scalar_lea.hbm %s0, %s196
          %s199 = sshll.u32 %s191, 4
          %s200 = int_to_ptr.vmem [resolvable:$true] %s199
          %202 = dma.hbm_to_vmem [thread:$0]  %s197, 256, %s200, %s188
        $region36: #{tpu_custom_call.1} parent=31 // pred_fallthru
          _
      $region32: #{tpu_custom_call.1} parent=5 // pred_fallthru
        _
      %p203 = scmp.le.s32.totalorder 1, %s17
      %p204 = scmp.lt.s32.totalorder %s17, 3
      %p205 = pnand %p203, %p204
      %p206 = pneg %p205
      // Predicated region
      $region37: #{tpu_custom_call.1} parent=5 // pred_check
        _
      $region38: #{tpu_custom_call.1} parent=5 // pred_check_branch
        %208 = sbr.rel (%p205) target = $region40
      $region39: #{tpu_custom_call.1} parent=5 // pred_region
        %s209 = ssub.s32 %s17, 1
        %s210 = sand.u32 %s30, 1
        %s211 = scalar_lea.sflag [#allocation3], %s210
        %s212 = sand.u32 %s30, 1
        %s213 = smul.addr %s212, 16
        %s214 = scalar_lea.vmem [#allocation2], %s213
        // Predicated region
        $region41: #{tpu_custom_call.1} parent=39 // pred_check
          %p215 = pneg %p43
        $region42: #{tpu_custom_call.1} parent=39 // pred_check_branch
          %217 = sbr.rel (%p215) target = $region44
        $region43: #{tpu_custom_call.1} parent=39 // pred_region
          %218 = dma.done %s211, 256
        $region44: #{tpu_custom_call.1} parent=39 // pred_fallthru
          _
        %s219 = sand.u32 %s30, 1
        %s220 = scalar_lea.sflag [#allocation3], %s219
        %s221 = sand.u32 %s30, 1
        %s222 = smul.addr %s221, 16
        %s223 = scalar_lea.vmem [#allocation2], %s222
        %p224 = pneg %p43
        %p225 = pneg %p40
        %p226 = pneg %p64
        %p227 = pneg %p61
        %p228 = pneg %p85
        %p229 = pneg %p82
        %p230 = pneg %p106
        %p231 = pneg %p103
        %p232 = pneg %p127
        %p233 = pneg %p124
        %p234 = pneg %p153
        %p235 = pneg %p150
        %s236 = sand.u32 %s140, 1
        %s237 = scalar_lea.sflag [#allocation4], %s236
        %s238 = sand.u32 %s140, 1
        %s239 = smul.addr %s238, 16
        %s240 = scalar_lea.vmem [#allocation5], %s239
        %v241 = vlaneseq
        %v242 = vand.u32 %v241, 127
        %v243 = vadd.s32 %v242, 128
        %v244 = vand.u32 %v242, 15
        %v245 = vand.u32 %v243, 15
        %vm246 = vcmp.ge.s32.totalorder %v242, 16
        %vm247 = vcmp.ge.s32.totalorder %v243, 16
        %vm248 = vcmp.lt.s32.totalorder %v242, 240
        %vm249 = vcmp.lt.s32.totalorder %v243, 240
        %vm250 = vcmp.ge.s32.totalorder %v244, 1
        %vm251 = vcmp.ge.s32.totalorder %v245, 1
        %vm252 = vcmp.lt.s32.totalorder %v244, 15
        %vm253 = vcmp.lt.s32.totalorder %v245, 15
        %vm254 = vmand %vm246, %vm250
        %vm255 = vmand %vm247, %vm251
        %vm256 = vmand %vm246, %vm252
        %vm257 = vmand %vm247, %vm253
        %vm258 = vmand %vm248, %vm250
        %vm259 = vmand %vm249, %vm251
        %vm260 = vmand %vm248, %vm252
        %vm261 = vmand %vm249, %vm253
        %v262 = vld [vmem:[%s1] sm:$0xff]
        %v263 = vld [vmem:[%s2] sm:$0xff]
        %v264 = vld [vmem:[%s3] sm:$0xff]
        %v265 = vld [vmem:[%s4] sm:$0xff]
        %v266 = vld [vmem:[%s214] sm:$0xff]
        %v267 = vld [vmem:[%s214 + $0x8] sm:$0xff]
        %268 = vrot.lane.b32.xlu0 %v266, 17
        %v269 = vpop.permute.xlu0 %268
        %270 = vrot.lane.b32.xlu0 %v267, 17
        %v271 = vpop.permute.xlu0 %270
        %vm272 = vcmp.lt.s32.totalorder %v242, 17
        %v273 = vsel %vm272, %v269, %v271
        %v274 = vsel %vm272, %v271, %v269
        %v275 = vsel %vm254, %v274, 0.0
        %v276 = vsel %vm255, %v273, 0.0
        %277 = vrot.lane.b32.xlu0 %v266, 16
        %v278 = vpop.permute.xlu0 %277
        %279 = vrot.lane.b32.xlu0 %v267, 16
        %v280 = vpop.permute.xlu0 %279
        %vm281 = vcmp.lt.s32.totalorder %v242, 16
        %v282 = vsel %vm281, %v278, %v280
        %v283 = vsel %vm281, %v280, %v278
        %v284 = vsel %vm246, %v283, 0.0
        %v285 = vsel %vm247, %v282, 0.0
        %286 = vrot.lane.b32.xlu0 %v266, 15
        %v287 = vpop.permute.xlu0 %286
        %288 = vrot.lane.b32.xlu0 %v267, 15
        %v289 = vpop.permute.xlu0 %288
        %vm290 = vcmp.lt.s32.totalorder %v242, 15
        %v291 = vsel %vm290, %v287, %v289
        %v292 = vsel %vm290, %v289, %v287
        %v293 = vsel %vm256, %v292, 0.0
        %v294 = vsel %vm257, %v291, 0.0
        %295 = vrot.lane.b32.xlu0 %v266, 1
        %v296 = vpop.permute.xlu0 %295
        %297 = vrot.lane.b32.xlu0 %v267, 1
        %v298 = vpop.permute.xlu0 %297
        %vm299 = vcmp.lt.s32.totalorder %v242, 1
        %v300 = vsel %vm299, %v296, %v298
        %v301 = vsel %vm299, %v298, %v296
        %v302 = vsel %vm250, %v301, 0.0
        %v303 = vsel %vm251, %v300, 0.0
        %304 = vrot.lane.b32.xlu0 %v266, 127
        %v305 = vpop.permute.xlu0 %304
        %306 = vrot.lane.b32.xlu0 %v267, 127
        %v307 = vpop.permute.xlu0 %306
        %vm308 = vcmp.lt.s32.totalorder %v242, 127
        %v309 = vsel %vm308, %v305, %v307
        %v310 = vsel %vm308, %v307, %v305
        %v311 = vsel %vm252, %v309, 0.0
        %v312 = vsel %vm253, %v310, 0.0
        %313 = vrot.lane.b32.xlu0 %v266, 113
        %v314 = vpop.permute.xlu0 %313
        %315 = vrot.lane.b32.xlu0 %v267, 113
        %v316 = vpop.permute.xlu0 %315
        %vm317 = vcmp.lt.s32.totalorder %v242, 113
        %v318 = vsel %vm317, %v314, %v316
        %v319 = vsel %vm317, %v316, %v314
        %v320 = vsel %vm258, %v318, 0.0
        %v321 = vsel %vm259, %v319, 0.0
        %322 = vrot.lane.b32.xlu0 %v266, 112
        %v323 = vpop.permute.xlu0 %322
        %324 = vrot.lane.b32.xlu0 %v267, 112
        %v325 = vpop.permute.xlu0 %324
        %vm326 = vcmp.lt.s32.totalorder %v242, 112
        %v327 = vsel %vm326, %v323, %v325
        %v328 = vsel %vm326, %v325, %v323
        %v329 = vsel %vm248, %v327, 0.0
        %v330 = vsel %vm249, %v328, 0.0
        %331 = vrot.lane.b32.xlu0 %v266, 111
        %v332 = vpop.permute.xlu0 %331
        %333 = vrot.lane.b32.xlu0 %v267, 111
        %v334 = vpop.permute.xlu0 %333
        %vm335 = vcmp.lt.s32.totalorder %v242, 111
        %v336 = vsel %vm335, %v332, %v334
        %v337 = vsel %vm335, %v334, %v332
        %v338 = vsel %vm260, %v336, 0.0
        %v339 = vsel %vm261, %v337, 0.0
        %341 = vset.pattern.permute.xlu0 0
        %342 = vperm.xlu0 %341, %v263
        %v343 = vpop.permute.xlu0 %342
        %vm345 = vcmask 588800
        %v347 = vsel %vm345, %v262, 0
        %349 = vmatprep.subr.mxu0 0.0
        %350 = vmatpush1.msra.mxu0 0.0
        %351 = vmatprep.subr.mxu0 0.0
        %352 = vmatpush1.msra.mxu0 0.0
        %353 = vmatprep.subr.mxu0 0.0
        %354 = vmatpush1.msra.mxu0 0.0
        %355 = vmatprep.subr.mxu0 0.0
        %356 = vmatpush1.msra.mxu0 0.0
        %357 = vmatprep.subr.mxu0 0.0
        %358 = vmatpush1.msra.mxu0 0.0
        %359 = vmatprep.subr.mxu0 0.0
        %360 = vmatpush1.msra.mxu0 0.0
        %361 = vmatprep.subr.mxu0 0.0
        %362 = vmatpush1.msra.mxu0 0.0
        %363 = vmatprep.subr.mxu0 %v339
        %364 = vmatpush1.msra.mxu0 %v338
        %365 = vmatprep.subr.mxu0 %v330
        %366 = vmatpush1.msra.mxu0 %v329
        %367 = vmatprep.subr.mxu0 %v321
        %368 = vmatpush1.msra.mxu0 %v320
        %369 = vmatprep.subr.mxu0 %v312
        %370 = vmatpush1.msra.mxu0 %v311
        %371 = vmatprep.subr.mxu0 %v267
        %372 = vmatpush1.msra.mxu0 %v266
        %373 = vmatprep.subr.mxu0 %v303
        %374 = vmatpush1.msra.mxu0 %v302
        %375 = vmatprep.subr.mxu0 %v294
        %376 = vmatpush1.msra.mxu0 %v293
        %377 = vmatprep.subr.mxu0 %v285
        %378 = vmatpush1.msra.mxu0 %v284
        %379 = vmatprep.subr.mxu0 %v276
        %380 = vmatpush1.msra.mxu0 %v275
        %381 = vmatprep.subr.mxu0 0.0
        %382 = vmatpush2.msra.mxu0 0.0
        %383 = vmatprep.subr.mxu0 0.0
        %384 = vmatpush2.msra.mxu0 0.0
        %385 = vmatprep.subr.mxu0 0.0
        %386 = vmatpush2.msra.mxu0 0.0
        %387 = vmatprep.subr.mxu0 0.0
        %388 = vmatpush2.msra.mxu0 0.0
        %389 = vmatprep.subr.mxu0 0.0
        %390 = vmatpush2.msra.mxu0 0.0
        %391 = vmatprep.subr.mxu0 0.0
        %392 = vmatpush2.msra.mxu0 0.0
        %393 = vmatprep.subr.mxu0 0.0
        %394 = vmatpush2.msra.mxu0 0.0
        %395 = vmatprep.subr.mxu0 0.0
        %396 = vmatpush2.msra.mxu0 0.0
        %397 = vmatprep.subr.mxu0 0.0
        %398 = vmatpush2.msra.mxu0 0.0
        %399 = vmatprep.subr.mxu0 0.0
        %400 = vmatpush2.msra.mxu0 0.0
        %401 = vmatprep.subr.mxu0 0.0
        %402 = vmatpush2.msra.mxu0 0.0
        %403 = vmatprep.subr.mxu0 0.0
        %404 = vmatpush2.msra.mxu0 0.0
        %405 = vmatprep.subr.mxu0 0.0
        %406 = vmatpush2.msra.mxu0 0.0
        %407 = vmatprep.subr.mxu0 0.0
        %408 = vmatpush2.msra.mxu0 0.0
        %409 = vmatprep.subr.mxu0 0.0
        %410 = vmatpush2.msra.mxu0 0.0
        %411 = vmatprep.subr.mxu0 0.0
        %412 = vmatpush2.msra.mxu0 0.0
        %413 = vmatprep.mubr.f32.mxu0 0.0
        %414 = vmatmul.mubr.f32.gmra.mxu0 %v347
        %v415 = vpop.f32.mrf.mxu0
        %v416 = vadd.f32 %v343, %v415
        %v417 = vpop.f32.mrf.mxu0
        %v418 = vadd.f32 %v343, %v417
        %419 = vdwg.mxu0
        %v420 = vadd.f32 %v416, %v418
        %421 = vadd.xlane.f32.xlu0 %v420
        %v422 = vpop.xlane.xlu0 %421
        %vm423 = vcmask 1043456
        %v424 = vsel %vm423, %v422, 0.0
        %v425 = vrot.slane %v424, 4
        %v426 = vadd.f32 %v424, %v425
        %v427 = vrot.slane %v426, 2
        %v428 = vadd.f32 %v426, %v427
        %v429 = vrot.slane %v428, 1
        %v430 = vadd.f32 %v428, %v429
        %v431 = vmul.f32 %v430, 0.0009765625
        %v433 = vrot.slane %v422, 4
        %v435 = vsel %vm423, %v433, 0.0
        %v436 = vrot.slane %v435, 4
        %v437 = vadd.f32 %v435, %v436
        %v438 = vrot.slane %v437, 2
        %v439 = vadd.f32 %v437, %v438
        %v440 = vrot.slane %v439, 1
        %v441 = vadd.f32 %v439, %v440
        %v442 = vmul.f32 %v441, 0.0009765625
        %v443 = vsel %vm423, %v431, %v442
        %445 = vset.pattern.permute.xlu0 0
        %446 = vperm.xlu0 %445, %v443
        %v447 = vpop.permute.xlu0 %446
        %v449 = vsub.f32 %v416, %v447
        %v450 = vsub.f32 %v418, %v447
        %v451 = vmul.f32 %v449, %v449
        %v452 = vmul.f32 %v450, %v450
        %v453 = vadd.f32 %v451, %v452
        %454 = vadd.xlane.f32.xlu0 %v453
        %v455 = vpop.xlane.xlu0 %454
        %v456 = vsel %vm423, %v455, 0.0
        %v457 = vrot.slane %v456, 4
        %v458 = vadd.f32 %v456, %v457
        %v459 = vrot.slane %v458, 2
        %v460 = vadd.f32 %v458, %v459
        %v461 = vrot.slane %v460, 1
        %v462 = vadd.f32 %v460, %v461
        %v463 = vmul.f32 %v462, 0.0009765625
        %v464 = vadd.f32 %v463, 1e-05
        %v465 = vrsqrt.pop %v464
        %v467 = vrot.slane %v455, 4
        %v469 = vsel %vm423, %v467, 0.0
        %v470 = vrot.slane %v469, 4
        %v471 = vadd.f32 %v469, %v470
        %v472 = vrot.slane %v471, 2
        %v473 = vadd.f32 %v471, %v472
        %v474 = vrot.slane %v473, 1
        %v475 = vadd.f32 %v473, %v474
        %v476 = vmul.f32 %v475, 0.0009765625
        %v477 = vadd.f32 %v476, 1e-05
        %v478 = vrsqrt.pop %v477
        %v479 = vsel %vm423, %v465, %v478
        %v480 = vmul.f32 %v479, %v264
        %482 = vset.pattern.permute.xlu0 0
        %483 = vperm.xlu0 %482, %v480
        %v484 = vpop.permute.xlu0 %483
        %v486 = vmul.f32 %v449, %v484
        %v487 = vmul.f32 %v450, %v484
        %489 = vset.pattern.permute.xlu0 0
        %490 = vperm.xlu0 %489, %v265
        %v491 = vpop.permute.xlu0 %490
        %v493 = vadd.f32 %v486, %v491
        %v494 = vadd.f32 %v487, %v491
        %vm495 = vcmp.ge.f32.partialorder %v493, 0.0
        %vm496 = vcmp.ge.f32.partialorder %v494, 0.0
        %v497 = vmul.f32 %v493, 0.2
        %v498 = vmul.f32 %v494, 0.2
        %v499 = vsel %vm495, %v493, %v497
        %v500 = vsel %vm496, %v494, %v498
        %501 = vst [vmem:[%s240] sm:$0xff] %v499
        %502 = vst [vmem:[%s240 + $0x8] sm:$0xff] %v500
        %s503 = sand.u32 %s140, 1
        %s504 = scalar_lea.sflag [#allocation4], %s503
        %s505 = sand.u32 %s140, 1
        %s506 = smul.addr %s505, 16
        %s507 = scalar_lea.vmem [#allocation5], %s506
        // Predicated region
        $region45: #{tpu_custom_call.1} parent=39 // pred_check
          %p508 = pneg %p150
        $region46: #{tpu_custom_call.1} parent=39 // pred_check_branch
          %510 = sbr.rel (%p508) target = $region48
        $region47: #{tpu_custom_call.1} parent=39 // pred_region
          %s512 = ssub.s32 256, 256
          %513 = vsyncadd %s504, %s512
          %s514 = smul.addr %s22, 2
          %s515 = smul.addr %s514, 128
          %s516 = scalar_lea.hbm %s5, %s515
          %s518 = sshll.u32 %s507, 4
          %s519 = int_to_ptr.vmem [resolvable:$true] %s518
          %521 = dma.vmem_to_hbm [thread:$0]  %s519, 256, %s516, %s504
        $region48: #{tpu_custom_call.1} parent=39 // pred_fallthru
          _
      $region40: #{tpu_custom_call.1} parent=5 // pred_fallthru
        _
      %p522 = scmp.le.s32.totalorder 2, %s17
      // Predicated region
      $region49: #{tpu_custom_call.1} parent=5 // pred_check
        %p523 = pneg %p522
      $region50: #{tpu_custom_call.1} parent=5 // pred_check_branch
        %525 = sbr.rel (%p523) target = $region52
      $region51: #{tpu_custom_call.1} parent=5 // pred_region
        %s526 = ssub.s32 %s17, 2
        // Predicated region
        $region53: #{tpu_custom_call.1} parent=51 // pred_check
          %p527 = pneg %p156
        $region54: #{tpu_custom_call.1} parent=51 // pred_check_branch
          %529 = sbr.rel (%p527) target = $region56
        $region55: #{tpu_custom_call.1} parent=51 // pred_region
          %s530 = sand.u32 %s141, 1
          %s531 = scalar_lea.sflag [#allocation4], %s530
          %s532 = sand.u32 %s141, 1
          %s533 = smul.addr %s532, 16
          %s534 = scalar_lea.vmem [#allocation5], %s533
          %535 = dma.done %s531, 256
        $region56: #{tpu_custom_call.1} parent=51 // pred_fallthru
          _
      $region52: #{tpu_custom_call.1} parent=5 // pred_fallthru
        _
    $region6: #{tpu_custom_call.1} parent=1 // loop_footer
      %s21 = sadd.s32 1, %s17
    $region7: #{tpu_custom_call.1} parent=1 // loop_footer_branch
      %16 = sbr.rel target = $region3
    $region8: #{tpu_custom_call.1} parent=1 // loop_exit
      _
    %536 = vsyncpa [#allocation3], 1
    %s537 = scalar_lea.sflag [#allocation3], 1
    %538 = vsyncpa %s537, 1
    %539 = vsyncpa [#allocation4], 1
    %s540 = scalar_lea.sflag [#allocation4], 1
    %541 = vsyncpa %s540, 1

</llo_original>
